<compile_context>
chip_gen: v7x
topology: tpu7x:2x2x1
jax: 0.10.0
libtpu: 0.0.40
codegen_flags: <defaults>
</compile_context>

<pallas_src>
import functools

import jax
import jax.numpy as jnp
from jax import lax
from jax.experimental import pallas as pl
from jax.experimental.pallas import tpu as pltpu


def _a2c_dnd_lstm_kernel(
    act_ref,      # (B, Din + 3H)  = [ x | h | cue | c ]
    keys_ref,     # (L, H)  DND keys
    vals_ref,     # (L, H)  DND values
    wg_ref,       # (Din + H, 5H)  fused gate weights (acts on [x | h])
    bg_ref,       # (1, 5H)        fused gate bias
    wh_ref,       # (H, A + 1)     fused actor|critic head weights
    bh_ref,       # (1, A + 1)     fused actor|critic head bias
    out_ref,      # (B, OUT_W)     = [ softmax(A) | value(1) | h_t(H) | c_t(H) | 0-pad ]
    *, din, hid, n_act, mm_dtype,
):
    H, A = hid, n_act
    B = act_ref.shape[0]
    L = keys_ref.shape[0]

    slab = act_ref[...]
    xh = slab[:, : din + H]                      # (B, Din+H)   = [x | h]
    cue = slab[:, din + H: din + 2 * H]          # (B, H)
    c = slab[:, din + 2 * H: din + 3 * H]        # (B, H)

    # ---------- DND retrieval: 1-NN under the (negative) L2 kernel -----------
    #   argmax_l -||cue - k_l||_2  ==  argmax_l  2*cue.k_l - ||k_l||^2
    # (sqrt dropped and squared-norm expansion used: monotone, same argmax; the
    #  (B, L, H) broadcast intermediate and XLU reduce are replaced by MXU dots)
    keys = keys_ref[...]                                              # (L, H)
    dots = lax.dot_general(cue, keys, (((1,), (1,)), ((), ())),
                           preferred_element_type=jnp.float32)        # (B, L)
    ksq = lax.dot_general(jnp.ones((1, H), jnp.float32), keys * keys,
                          (((1,), (1,)), ((), ())),
                          preferred_element_type=jnp.float32)         # (1, L)
    sim = 2.0 * dots - ksq                                            # (B, L)
    maxv = jnp.max(sim, axis=-1, keepdims=True)                       # (B, 1)
    iota = lax.broadcasted_iota(jnp.int32, sim.shape, 1)              # (B, L)
    cand = jnp.where(sim >= maxv, iota, L)
    best = jnp.min(cand, axis=-1, keepdims=True)        # first argmax (tie-break)
    onehot = (iota == best).astype(jnp.float32)                       # (B, L)
    m_t = jnp.dot(onehot, vals_ref[...],
                  preferred_element_type=jnp.float32)                 # (B, H)

    # ---------- EpLSTM cell: ONE fused gate matmul ----------------------------
    pre = (jnp.dot(xh.astype(mm_dtype), wg_ref[...].astype(mm_dtype),
                   preferred_element_type=jnp.float32)
           + bg_ref[...])                                             # (B, 5H)
    f_t = jax.nn.sigmoid(pre[:, 0 * H:1 * H])
    i_t = jax.nn.sigmoid(pre[:, 1 * H:2 * H])
    o_t = jax.nn.sigmoid(pre[:, 2 * H:3 * H])
    r_t = jax.nn.sigmoid(pre[:, 3 * H:4 * H])
    g_t = jnp.tanh(pre[:, 4 * H:5 * H])
    # TODO(synk): noise_idx / noise_level gate-noise injection (train-time
    #             perturbation) is not implemented; this is the noise_idx=None path.
    c_t = c * f_t + i_t * g_t + r_t * jnp.tanh(m_t)
    h_t = o_t * jnp.tanh(c_t)

    # ---------- fused actor|critic head ---------------------------------------
    head = (jnp.dot(h_t.astype(mm_dtype), wh_ref[...].astype(mm_dtype),
                    preferred_element_type=jnp.float32)
            + bh_ref[...])                                            # (B, A+1)
    logits = head[:, :A]
    value = head[:, A:A + 1]
    z = logits - jnp.max(logits, axis=-1, keepdims=True)
    e = jnp.exp(z)
    probs = e / jnp.sum(e, axis=-1, keepdims=True)

    # ---------- single lane-dense output slab (one unmasked store) ------------
    used = A + 1 + 2 * H
    pieces = [probs, value, h_t, c_t]
    pad = out_ref.shape[1] - used
    if pad:
        pieces.append(jnp.zeros((B, pad), jnp.float32))
    out_ref[...] = jnp.concatenate(pieces, axis=-1)


def a2c_dnd_lstm_forward(data, cue, mem_state, dnd_keys, dnd_vals, params,
                         matmul_dtype=jnp.float32):
    """One A2C-DND-LSTM forward step (batched over independent environments).

    matmul_dtype=jnp.bfloat16 is recommended on v6e/v7x with real batches
    (MXU operands only; accumulation and all elementwise math stay float32,
    which also matches v5e's f32-only VPU/EUP).
    """
    state, p_action, p_reward, timestep = data
    x_t = jnp.concatenate([state, p_action, p_reward, timestep],
                          axis=-1).astype(jnp.float32)
    B, Din = x_t.shape
    H = params["h0"].shape[0]
    A = params["wa"].shape[-1]
    # TODO(synk): empty-memory / retrieval_off path of the reference DND
    #             (returning a zero memory vector) is not handled; dict_len > 0
    #             with valid keys is assumed.

    if mem_state is None:
        h = jnp.broadcast_to(params["h0"][None, :], (B, H)).astype(jnp.float32)
        c = jnp.broadcast_to(params["c0"][None, :], (B, H)).astype(jnp.float32)
    else:
        h, c = mem_state
        h = h.astype(jnp.float32)
        c = c.astype(jnp.float32)

    # --- free layout plumbing (outside the kernel; constant-folds under jit) ---
    # one lane-dense activation slab: [x | h | cue | c]
    slab = jnp.concatenate([x_t, h, cue.astype(jnp.float32), c], axis=-1)
    # stacked gate weights (5, in, H) -> (in, 5H), fused over [x | h]
    wih_flat = jnp.transpose(params["wih"], (1, 0, 2)).reshape(Din, 5 * H)
    whh_flat = jnp.transpose(params["whh"], (1, 0, 2)).reshape(H, 5 * H)
    wg = jnp.concatenate([wih_flat, whh_flat], axis=0)            # (Din+H, 5H)
    bg = params["b"].reshape(1, 5 * H)
    # fused actor|critic head
    wh = jnp.concatenate([params["wa"], params["wc"]], axis=1)    # (H, A+1)
    bh = jnp.concatenate([params["ba"], params["bc"]], axis=1)    # (1, A+1)

    used = A + 1 + 2 * H
    out_w = ((used + 127) // 128) * 128   # lane-dense output slab width

    vmem = lambda: pl.BlockSpec(memory_space=pltpu.MemorySpace.VMEM)
    out = pl.pallas_call(
        functools.partial(_a2c_dnd_lstm_kernel, din=Din, hid=H, n_act=A,
                          mm_dtype=matmul_dtype),
        out_shape=jax.ShapeDtypeStruct((B, out_w), jnp.float32),
        in_specs=[vmem() for _ in range(7)],
        out_specs=vmem(),
    )(slab,
      dnd_keys.astype(jnp.float32), dnd_vals.astype(jnp.float32),
      wg.astype(jnp.float32), bg.astype(jnp.float32),
      wh.astype(jnp.float32), bh.astype(jnp.float32))

    action_dist = out[:, :A]
    value = out[:, A:A + 1]
    h_t = out[:, A + 1:A + 1 + H]
    c_t = out[:, A + 1 + H:A + 1 + 2 * H]
    return action_dist, value, (h_t, c_t)


def init_params(key, input_dim, hidden_dim, num_actions):
    """Deterministic synthetic parameter init (shapes match the torch module)."""
    ks = jax.random.split(key, 8)
    s = 1.0 / jnp.sqrt(hidden_dim)
    return {
        "h0": jax.random.normal(ks[0], (hidden_dim,), jnp.float32),
        "c0": jax.random.normal(ks[1], (hidden_dim,), jnp.float32),
        # stacked gate weights: (5, in, H), (5, H, H), combined bias (5, H)
        "wih": jax.random.uniform(ks[2], (5, input_dim, hidden_dim),
                                  jnp.float32, -s, s),
        "whh": jax.random.uniform(ks[3], (5, hidden_dim, hidden_dim),
                                  jnp.float32, -s, s),
        "b":   jax.random.uniform(ks[4], (5, hidden_dim), jnp.float32, -s, s),
        # actor (orthogonal gain 0.01 in torch -> small deterministic init here)
        "wa":  0.01 * jax.random.normal(ks[5], (hidden_dim, num_actions), jnp.float32),
        "ba":  jnp.zeros((1, num_actions), jnp.float32),
        # critic
        "wc":  jax.random.normal(ks[6], (hidden_dim, 1), jnp.float32),
        "bc":  jnp.zeros((1, 1), jnp.float32),
    }


if __name__ == "__main__":
    B = 8                      # batch of independent environments (fills sublanes)
    state_dim = 26
    num_actions = 4
    hidden_dim = 32
    dict_len = 16
    input_dim = state_dim + num_actions + 1 + 1   # state + p_action + p_reward + timestep

    root = jax.random.PRNGKey(0)
    kp, k1, k2, k3, k4, k5, k6, k7 = jax.random.split(root, 8)

    params = init_params(kp, input_dim, hidden_dim, num_actions)

    state = jax.random.normal(k1, (B, state_dim), jnp.float32)
    p_action = jax.nn.one_hot(
        jax.random.randint(k2, (B,), 0, num_actions), num_actions).astype(jnp.float32)
    p_reward = jax.random.normal(k3, (B, 1), jnp.float32)
    timestep = jnp.full((B, 1), 0.5, jnp.float32)
    data = (state, p_action, p_reward, timestep)

    cue = jax.random.normal(k4, (B, hidden_dim), jnp.float32)
    dnd_keys = jax.random.normal(k5, (dict_len, hidden_dim), jnp.float32)
    dnd_vals = jax.random.normal(k6, (dict_len, hidden_dim), jnp.float32)

    action_dist, value, (h_t, c_t) = a2c_dnd_lstm_forward(
        data, cue, None, dnd_keys, dnd_vals, params)
    jax.block_until_ready((action_dist, value, h_t, c_t))

    assert action_dist.shape == (B, num_actions)
    assert value.shape == (B, 1)
    assert h_t.shape == (B, hidden_dim) and c_t.shape == (B, hidden_dim)
    print("KERNEL_OK")
</pallas_src>

<mosaic_0001>
module attributes {stable_mosaic.version = 11 : i64} {
  func.func @_a2c_dnd_lstm_kernel(%arg0: memref<8x128xf32, #tpu.memory_space<vmem>>, %arg1: memref<16x32xf32, #tpu.memory_space<vmem>>, %arg2: memref<16x32xf32, #tpu.memory_space<vmem>>, %arg3: memref<64x160xf32, #tpu.memory_space<vmem>>, %arg4: memref<1x160xf32, #tpu.memory_space<vmem>>, %arg5: memref<32x5xf32, #tpu.memory_space<vmem>>, %arg6: memref<1x5xf32, #tpu.memory_space<vmem>>, %arg7: memref<8x128xf32, #tpu.memory_space<vmem>>) attributes {dimension_semantics = [], scalar_prefetch = 0 : i64, scratch_operands = 0 : i64, tpu.core_type = #tpu.core_type<tc>} {
    %c0 = arith.constant 0 : index
    %c0_0 = arith.constant 0 : index
    %0 = vector.load %arg0[%c0, %c0_0] : memref<8x128xf32, #tpu.memory_space<vmem>>, vector<8x128xf32>
    %1 = vector.extract_strided_slice %0 {offsets = [0, 0], sizes = [8, 64], strides = [1, 1]} : vector<8x128xf32> to vector<8x64xf32>
    %2 = vector.extract_strided_slice %0 {offsets = [0, 64], sizes = [8, 32], strides = [1, 1]} : vector<8x128xf32> to vector<8x32xf32>
    %3 = vector.extract_strided_slice %0 {offsets = [0, 96], sizes = [8, 32], strides = [1, 1]} : vector<8x128xf32> to vector<8x32xf32>
    %c0_1 = arith.constant 0 : index
    %c0_2 = arith.constant 0 : index
    %4 = vector.load %arg1[%c0_1, %c0_2] : memref<16x32xf32, #tpu.memory_space<vmem>>, vector<16x32xf32>
    %cst = arith.constant dense<0.000000e+00> : vector<8x16xf32>
    %5 = tpu.matmul %2, %4, %cst {dimension_numbers = #tpu.dot_dimension_numbers<[1], [1], [0], [0], [0, 0, 1, 0], [], []>} : vector<8x32xf32>, vector<16x32xf32>, vector<8x16xf32> -> vector<8x16xf32>
    %cst_3 = arith.constant 1.000000e+00 : f32
    %6 = vector.broadcast %cst_3 : f32 to vector<1x32xf32>
    %7 = arith.mulf %4, %4 : vector<16x32xf32>
    %cst_4 = arith.constant dense<0.000000e+00> : vector<1x16xf32>
    %8 = tpu.matmul %6, %7, %cst_4 {dimension_numbers = #tpu.dot_dimension_numbers<[1], [1], [0], [0], [0, 0, 1, 0], [], []>} : vector<1x32xf32>, vector<16x32xf32>, vector<1x16xf32> -> vector<1x16xf32>
    %cst_5 = arith.constant 2.000000e+00 : f32
    %9 = vector.broadcast %cst_5 : f32 to vector<8x16xf32>
    %10 = arith.mulf %9, %5 : vector<8x16xf32>
    %11 = vector.broadcast %8 : vector<1x16xf32> to vector<8x16xf32>
    %12 = arith.subf %10, %11 : vector<8x16xf32>
    %cst_6 = arith.constant dense<0xFF800000> : vector<8xf32>
    %13 = vector.multi_reduction <maximumf>, %12, %cst_6 [1] : vector<8x16xf32> to vector<8xf32>
    %14 = vector.shape_cast %13 : vector<8xf32> to vector<8x1xf32>
    %15 = tpu.iota {dimensions = array<i32: 1>} : vector<8x16xi32>
    %16 = vector.broadcast %14 : vector<8x1xf32> to vector<8x16xf32>
    %17 = arith.cmpf oge, %12, %16 : vector<8x16xf32>
    %c16_i32 = arith.constant 16 : i32
    %18 = vector.broadcast %c16_i32 : i32 to vector<8x16xi32>
    %19 = arith.select %17, %15, %18 : vector<8x16xi1>, vector<8x16xi32>
    %cst_7 = arith.constant dense<2147483647> : vector<8xi32>
    %20 = vector.multi_reduction <minsi>, %19, %cst_7 [1] : vector<8x16xi32> to vector<8xi32>
    %21 = vector.shape_cast %20 : vector<8xi32> to vector<8x1xi32>
    %22 = vector.broadcast %21 : vector<8x1xi32> to vector<8x16xi32>
    %23 = arith.cmpi eq, %15, %22 : vector<8x16xi32>
    %24 = arith.extui %23 : vector<8x16xi1> to vector<8x16xi32>
    %25 = arith.sitofp %24 : vector<8x16xi32> to vector<8x16xf32>
    %c0_8 = arith.constant 0 : index
    %c0_9 = arith.constant 0 : index
    %26 = vector.load %arg2[%c0_8, %c0_9] : memref<16x32xf32, #tpu.memory_space<vmem>>, vector<16x32xf32>
    %cst_10 = arith.constant dense<0.000000e+00> : vector<8x32xf32>
    %27 = tpu.matmul %25, %26, %cst_10 {dimension_numbers = #tpu.dot_dimension_numbers<[1], [0], [0], [1], [0, 0, 1, 1], [], []>} : vector<8x16xf32>, vector<16x32xf32>, vector<8x32xf32> -> vector<8x32xf32>
    %c0_11 = arith.constant 0 : index
    %c0_12 = arith.constant 0 : index
    %28 = vector.load %arg3[%c0_11, %c0_12] : memref<64x160xf32, #tpu.memory_space<vmem>>, vector<64x160xf32>
    %cst_13 = arith.constant dense<0.000000e+00> : vector<8x160xf32>
    %29 = tpu.matmul %1, %28, %cst_13 {dimension_numbers = #tpu.dot_dimension_numbers<[1], [0], [0], [1], [0, 0, 1, 1], [], []>} : vector<8x64xf32>, vector<64x160xf32>, vector<8x160xf32> -> vector<8x160xf32>
    %c0_14 = arith.constant 0 : index
    %c0_15 = arith.constant 0 : index
    %30 = vector.load %arg4[%c0_14, %c0_15] : memref<1x160xf32, #tpu.memory_space<vmem>>, vector<1x160xf32>
    %31 = vector.broadcast %30 : vector<1x160xf32> to vector<8x160xf32>
    %32 = arith.addf %29, %31 : vector<8x160xf32>
    %33 = vector.extract_strided_slice %32 {offsets = [0, 0], sizes = [8, 32], strides = [1, 1]} : vector<8x160xf32> to vector<8x32xf32>
    %34 = arith.negf %33 : vector<8x32xf32>
    %35 = math.exp %34 : vector<8x32xf32>
    %cst_16 = arith.constant 1.000000e+00 : f32
    %36 = vector.broadcast %cst_16 : f32 to vector<8x32xf32>
    %37 = arith.addf %36, %35 : vector<8x32xf32>
    %38 = arith.divf %36, %37 : vector<8x32xf32>
    %39 = vector.extract_strided_slice %32 {offsets = [0, 32], sizes = [8, 32], strides = [1, 1]} : vector<8x160xf32> to vector<8x32xf32>
    %40 = arith.negf %39 : vector<8x32xf32>
    %41 = math.exp %40 : vector<8x32xf32>
    %cst_17 = arith.constant 1.000000e+00 : f32
    %42 = vector.broadcast %cst_17 : f32 to vector<8x32xf32>
    %43 = arith.addf %42, %41 : vector<8x32xf32>
    %44 = arith.divf %42, %43 : vector<8x32xf32>
    %45 = vector.extract_strided_slice %32 {offsets = [0, 64], sizes = [8, 32], strides = [1, 1]} : vector<8x160xf32> to vector<8x32xf32>
    %46 = arith.negf %45 : vector<8x32xf32>
    %47 = math.exp %46 : vector<8x32xf32>
    %cst_18 = arith.constant 1.000000e+00 : f32
    %48 = vector.broadcast %cst_18 : f32 to vector<8x32xf32>
    %49 = arith.addf %48, %47 : vector<8x32xf32>
    %50 = arith.divf %48, %49 : vector<8x32xf32>
    %51 = vector.extract_strided_slice %32 {offsets = [0, 96], sizes = [8, 32], strides = [1, 1]} : vector<8x160xf32> to vector<8x32xf32>
    %52 = arith.negf %51 : vector<8x32xf32>
    %53 = math.exp %52 : vector<8x32xf32>
    %cst_19 = arith.constant 1.000000e+00 : f32
    %54 = vector.broadcast %cst_19 : f32 to vector<8x32xf32>
    %55 = arith.addf %54, %53 : vector<8x32xf32>
    %56 = arith.divf %54, %55 : vector<8x32xf32>
    %57 = vector.extract_strided_slice %32 {offsets = [0, 128], sizes = [8, 32], strides = [1, 1]} : vector<8x160xf32> to vector<8x32xf32>
    %58 = math.tanh %57 : vector<8x32xf32>
    %59 = arith.mulf %3, %38 : vector<8x32xf32>
    %60 = arith.mulf %44, %58 : vector<8x32xf32>
    %61 = arith.addf %59, %60 : vector<8x32xf32>
    %62 = math.tanh %27 : vector<8x32xf32>
    %63 = arith.mulf %56, %62 : vector<8x32xf32>
    %64 = arith.addf %61, %63 : vector<8x32xf32>
    %65 = math.tanh %64 : vector<8x32xf32>
    %66 = arith.mulf %50, %65 : vector<8x32xf32>
    %c0_20 = arith.constant 0 : index
    %c0_21 = arith.constant 0 : index
    %67 = vector.load %arg5[%c0_20, %c0_21] : memref<32x5xf32, #tpu.memory_space<vmem>>, vector<32x5xf32>
    %cst_22 = arith.constant dense<0.000000e+00> : vector<8x5xf32>
    %68 = tpu.matmul %66, %67, %cst_22 {dimension_numbers = #tpu.dot_dimension_numbers<[1], [0], [0], [1], [0, 0, 1, 1], [], []>} : vector<8x32xf32>, vector<32x5xf32>, vector<8x5xf32> -> vector<8x5xf32>
    %c0_23 = arith.constant 0 : index
    %c0_24 = arith.constant 0 : index
    %69 = vector.load %arg6[%c0_23, %c0_24] : memref<1x5xf32, #tpu.memory_space<vmem>>, vector<1x5xf32>
    %70 = vector.broadcast %69 : vector<1x5xf32> to vector<8x5xf32>
    %71 = arith.addf %68, %70 : vector<8x5xf32>
    %72 = vector.extract_strided_slice %71 {offsets = [0, 0], sizes = [8, 4], strides = [1, 1]} : vector<8x5xf32> to vector<8x4xf32>
    %73 = vector.extract_strided_slice %71 {offsets = [0, 4], sizes = [8, 1], strides = [1, 1]} : vector<8x5xf32> to vector<8x1xf32>
    %cst_25 = arith.constant dense<0xFF800000> : vector<8xf32>
    %74 = vector.multi_reduction <maximumf>, %72, %cst_25 [1] : vector<8x4xf32> to vector<8xf32>
    %75 = vector.shape_cast %74 : vector<8xf32> to vector<8x1xf32>
    %76 = vector.broadcast %75 : vector<8x1xf32> to vector<8x4xf32>
    %77 = arith.subf %72, %76 : vector<8x4xf32>
    %78 = math.exp %77 : vector<8x4xf32>
    %cst_26 = arith.constant dense<0.000000e+00> : vector<8xf32>
    %79 = vector.multi_reduction <add>, %78, %cst_26 [1] : vector<8x4xf32> to vector<8xf32>
    %80 = vector.shape_cast %79 : vector<8xf32> to vector<8x1xf32>
    %81 = vector.broadcast %80 : vector<8x1xf32> to vector<8x4xf32>
    %82 = arith.divf %78, %81 : vector<8x4xf32>
    %cst_27 = arith.constant 0.000000e+00 : f32
    %83 = vector.broadcast %cst_27 : f32 to vector<8x59xf32>
    %84 = tpu.concatenate %82, %73, %66, %64, %83 in 1 : vector<8x4xf32>, vector<8x1xf32>, vector<8x32xf32>, vector<8x32xf32>, vector<8x59xf32> -> vector<8x128xf32>
    %c0_28 = arith.constant 0 : index
    %c0_29 = arith.constant 0 : index
    %85 = vector.load %arg7[%c0_28, %c0_29] : memref<8x128xf32, #tpu.memory_space<vmem>>, vector<8x128xf32>
    tpu.vector_store %arg7[%c0_28, %c0_29], %84 {strides = array<i32>} : memref<8x128xf32, #tpu.memory_space<vmem>>, vector<8x128xf32>,
    return
  }
}

</mosaic_0001>

<llo_original>
// kernel: tpu_custom_call.1
$region0: #{tpu_custom_call.1}
  #allocation0 [shape = 'u32[]', space=smem, size = 0x4, offset = 0x4, fixed_abs, tag = 'smem constant byte address 0x4 - core index']
  #allocation1 [shape = 'u32[144,128]{1,0:T(1,128)}', space=vmem, size = 0x12000, scoped, tag = 'internal scratch']
  %s0 = inlined_call_operand.vmem [shape: f32[8,128], index: 0, kind: input, shape index: {}]
  %s1 = inlined_call_operand.vmem [shape: f32[16,32], index: 1, kind: input, shape index: {}]
  %s2 = inlined_call_operand.vmem [shape: f32[16,32], index: 2, kind: input, shape index: {}]
  %s3 = inlined_call_operand.hbm [shape: f32[64,160], index: 3, kind: input, shape index: {}]
  %s4 = inlined_call_operand.vmem [shape: f32[1,160], index: 4, kind: input, shape index: {}]
  %s5 = inlined_call_operand.vmem [shape: f32[32,5], index: 5, kind: input, shape index: {}]
  %s6 = inlined_call_operand.vmem [shape: f32[1,5], index: 6, kind: input, shape index: {}]
  %s7 = inlined_call_operand.hbm [shape: f32[8,128], index: 7, kind: output, shape index: {}]
  %s8 = sld [smem:[#allocation0]]
  $region42: #{tpu_custom_call.1} parent=0
    _
  %s10 = ssub.s32 1, %s8
  %s11 = scalar_select 0, %s10, %s8
  $region1: #{tpu_custom_call.1} parent=0
    #allocation2 [shape = 'u8[65536]{0}', space=vmem, size = 0x10000, scoped, tag = 'input window, operand 3, single buffered']
    #allocation3 [shape = 's32[1]{0}', space=sflag, size = 0x4, scoped, tag = 'scoped memory for tpu_custom_call.1']
    #allocation4 [shape = 's32[1]{0}', space=sflag, size = 0x4, scoped, tag = 'scoped memory for tpu_custom_call.1']
    #allocation5 [shape = 'u8[4096]{0}', space=vmem, size = 0x1000, scoped, tag = 'output window, operand 0, single buffered']
    %12 = vsyncpa [#allocation3], 0
    %13 = vsyncpa [#allocation4], 0
    // Predicated region
    $region2: #{tpu_custom_call.1} parent=1 // pred_check
      _
    $region3: #{tpu_custom_call.1} parent=1 // pred_check_branch
      %15 = sbr.rel (0) target = $region5
    $region4: #{tpu_custom_call.1} parent=1 // pred_region
      _
    $region5: #{tpu_custom_call.1} parent=1 // pred_fallthru
      _
    // Predicated region
    $region6: #{tpu_custom_call.1} parent=1 // pred_check
      _
    $region7: #{tpu_custom_call.1} parent=1 // pred_check_branch
      %17 = sbr.rel (0) target = $region9
    $region8: #{tpu_custom_call.1} parent=1 // pred_region
      _
    $region9: #{tpu_custom_call.1} parent=1 // pred_fallthru
      _
    // Predicated region
    $region10: #{tpu_custom_call.1} parent=1 // pred_check
      _
    $region11: #{tpu_custom_call.1} parent=1 // pred_check_branch
      %19 = sbr.rel (0) target = $region13
    $region12: #{tpu_custom_call.1} parent=1 // pred_region
      _
    $region13: #{tpu_custom_call.1} parent=1 // pred_fallthru
      _
    // Predicated region
    $region14: #{tpu_custom_call.1} parent=1 // pred_check
      _
    $region15: #{tpu_custom_call.1} parent=1 // pred_check_branch
      %21 = sbr.rel (0) target = $region17
    $region16: #{tpu_custom_call.1} parent=1 // pred_region
      %s23 = ssub.s32 2048, 2048
      %24 = vsyncadd [#allocation3], %s23
      %s25 = sshll.u32 [#allocation2], 4
      %s26 = int_to_ptr.vmem [resolvable:$true] %s25
      %31 = dma.hbm_to_vmem [thread:$0]  %s3, 2048, %s26, [#allocation3], 256, 256, 16
    $region17: #{tpu_custom_call.1} parent=1 // pred_fallthru
      _
    // Predicated region
    $region18: #{tpu_custom_call.1} parent=1 // pred_check
      _
    $region19: #{tpu_custom_call.1} parent=1 // pred_check_branch
      %33 = sbr.rel (0) target = $region21
    $region20: #{tpu_custom_call.1} parent=1 // pred_region
      _
    $region21: #{tpu_custom_call.1} parent=1 // pred_fallthru
      _
    // Predicated region
    $region22: #{tpu_custom_call.1} parent=1 // pred_check
      _
    $region23: #{tpu_custom_call.1} parent=1 // pred_check_branch
      %35 = sbr.rel (0) target = $region25
    $region24: #{tpu_custom_call.1} parent=1 // pred_region
      _
    $region25: #{tpu_custom_call.1} parent=1 // pred_fallthru
      _
    // Predicated region
    $region26: #{tpu_custom_call.1} parent=1 // pred_check
      _
    $region27: #{tpu_custom_call.1} parent=1 // pred_check_branch
      %37 = sbr.rel (0) target = $region29
    $region28: #{tpu_custom_call.1} parent=1 // pred_region
      _
    $region29: #{tpu_custom_call.1} parent=1 // pred_fallthru
      _
    // Predicated region
    $region30: #{tpu_custom_call.1} parent=1 // pred_check
      _
    $region31: #{tpu_custom_call.1} parent=1 // pred_check_branch
      %39 = sbr.rel (0) target = $region33
    $region32: #{tpu_custom_call.1} parent=1 // pred_region
      %40 = dma.done [#allocation3], 2048
    $region33: #{tpu_custom_call.1} parent=1 // pred_fallthru
      _
    %v41 = vld [vmem:[%s0] sm:$0xff]
    %v42 = vld [vmem:[%s1] sm:$0xff]
    %v43 = vld [vmem:[%s1 + $0x8] sm:$0xff]
    %45 = vrot.lane.b32.xlu0 %v41, 64
    %v46 = vpop.permute.xlu0 %45
    %vm47 = vcmask 261120
    %v48 = vsel %vm47, %v46, 0
    %v51 = vsel %vm47, %v42, 0
    %v54 = vsel %vm47, %v43, 0
    %56 = vmatprep.subr.mxu0 0.0
    %57 = vmatpush1.xpose.msra.mxu0 %v51
    %58 = vmatprep.subr.mxu0 0.0
    %59 = vmatpush1.xpose.msra.mxu0 %v54
    %60 = vmatprep.subr.mxu0 0.0
    %61 = vmatpush1.xpose.msra.mxu0 0.0
    %62 = vmatprep.subr.mxu0 0.0
    %63 = vmatpush1.xpose.msra.mxu0 0.0
    %64 = vmatprep.subr.mxu0 0.0
    %65 = vmatpush1.xpose.msra.mxu0 0.0
    %66 = vmatprep.subr.mxu0 0.0
    %67 = vmatpush1.xpose.msra.mxu0 0.0
    %68 = vmatprep.subr.mxu0 0.0
    %69 = vmatpush1.xpose.msra.mxu0 0.0
    %70 = vmatprep.subr.mxu0 0.0
    %71 = vmatpush1.xpose.msra.mxu0 0.0
    %72 = vmatprep.subr.mxu0 0.0
    %73 = vmatpush1.xpose.msra.mxu0 0.0
    %74 = vmatprep.subr.mxu0 0.0
    %75 = vmatpush1.xpose.msra.mxu0 0.0
    %76 = vmatprep.subr.mxu0 0.0
    %77 = vmatpush1.xpose.msra.mxu0 0.0
    %78 = vmatprep.subr.mxu0 0.0
    %79 = vmatpush1.xpose.msra.mxu0 0.0
    %80 = vmatprep.subr.mxu0 0.0
    %81 = vmatpush1.xpose.msra.mxu0 0.0
    %82 = vmatprep.subr.mxu0 0.0
    %83 = vmatpush1.xpose.msra.mxu0 0.0
    %84 = vmatprep.subr.mxu0 0.0
    %85 = vmatpush1.xpose.msra.mxu0 0.0
    %86 = vmatprep.subr.mxu0 0.0
    %87 = vmatpush1.xpose.msra.mxu0 0.0
    %88 = vmatprep.subr.mxu0 0.0
    %89 = vmatpush1.xpose.msra.mxu0 0.0
    %90 = vmatprep.subr.mxu0 0.0
    %91 = vmatpush1.xpose.msra.mxu0 0.0
    %92 = vmatprep.subr.mxu0 0.0
    %93 = vmatpush1.xpose.msra.mxu0 0.0
    %94 = vmatprep.subr.mxu0 0.0
    %95 = vmatpush1.xpose.msra.mxu0 0.0
    %96 = vmatprep.subr.mxu0 0.0
    %97 = vmatpush1.xpose.msra.mxu0 0.0
    %98 = vmatprep.subr.mxu0 0.0
    %99 = vmatpush1.xpose.msra.mxu0 0.0
    %100 = vmatprep.subr.mxu0 0.0
    %101 = vmatpush1.xpose.msra.mxu0 0.0
    %102 = vmatprep.subr.mxu0 0.0
    %103 = vmatpush1.xpose.msra.mxu0 0.0
    %104 = vmatprep.subr.mxu0 0.0
    %105 = vmatpush1.xpose.msra.mxu0 0.0
    %106 = vmatprep.subr.mxu0 0.0
    %107 = vmatpush1.xpose.msra.mxu0 0.0
    %108 = vmatprep.subr.mxu0 0.0
    %109 = vmatpush1.xpose.msra.mxu0 0.0
    %110 = vmatprep.subr.mxu0 0.0
    %111 = vmatpush1.xpose.msra.mxu0 0.0
    %112 = vmatprep.subr.mxu0 0.0
    %113 = vmatpush1.xpose.msra.mxu0 0.0
    %114 = vmatprep.subr.mxu0 0.0
    %115 = vmatpush1.xpose.msra.mxu0 0.0
    %116 = vmatprep.subr.mxu0 0.0
    %117 = vmatpush1.xpose.msra.mxu0 0.0
    %118 = vmatprep.subr.mxu0 0.0
    %119 = vmatpush1.xpose.msra.mxu0 0.0
    %120 = vmatprep.mubr.f32.mxu0 0.0
    %121 = vmatmul.mubr.f32.gmra.mrb[0].mxu0 %v48
    %v122 = vpop.f32.mrb[0].mxu0
    %v123 = vadd.f32 0.0, %v122
    %v124 = vpop.f32.mrb[0].mxu0
    %125 = vdwg.mxu0
    %v126 = vmul.f32 %v42, %v42
    %v127 = vmul.f32 %v43, %v43
    %v129 = vsel %vm47, 1.0, 0
    %v132 = vsel %vm47, %v126, 0
    %v135 = vsel %vm47, %v127, 0
    %137 = vmatprep.subr.mxu0 0.0
    %138 = vmatpush1.xpose.msra.mxu0 %v132
    %139 = vmatprep.subr.mxu0 0.0
    %140 = vmatpush1.xpose.msra.mxu0 %v135
    %141 = vmatprep.subr.mxu0 0.0
    %142 = vmatpush1.xpose.msra.mxu0 0.0
    %143 = vmatprep.subr.mxu0 0.0
    %144 = vmatpush1.xpose.msra.mxu0 0.0
    %145 = vmatprep.subr.mxu0 0.0
    %146 = vmatpush1.xpose.msra.mxu0 0.0
    %147 = vmatprep.subr.mxu0 0.0
    %148 = vmatpush1.xpose.msra.mxu0 0.0
    %149 = vmatprep.subr.mxu0 0.0
    %150 = vmatpush1.xpose.msra.mxu0 0.0
    %151 = vmatprep.subr.mxu0 0.0
    %152 = vmatpush1.xpose.msra.mxu0 0.0
    %153 = vmatprep.subr.mxu0 0.0
    %154 = vmatpush1.xpose.msra.mxu0 0.0
    %155 = vmatprep.subr.mxu0 0.0
    %156 = vmatpush1.xpose.msra.mxu0 0.0
    %157 = vmatprep.subr.mxu0 0.0
    %158 = vmatpush1.xpose.msra.mxu0 0.0
    %159 = vmatprep.subr.mxu0 0.0
    %160 = vmatpush1.xpose.msra.mxu0 0.0
    %161 = vmatprep.subr.mxu0 0.0
    %162 = vmatpush1.xpose.msra.mxu0 0.0
    %163 = vmatprep.subr.mxu0 0.0
    %164 = vmatpush1.xpose.msra.mxu0 0.0
    %165 = vmatprep.subr.mxu0 0.0
    %166 = vmatpush1.xpose.msra.mxu0 0.0
    %167 = vmatprep.subr.mxu0 0.0
    %168 = vmatpush1.xpose.msra.mxu0 0.0
    %169 = vmatprep.subr.mxu0 0.0
    %170 = vmatpush1.xpose.msra.mxu0 0.0
    %171 = vmatprep.subr.mxu0 0.0
    %172 = vmatpush1.xpose.msra.mxu0 0.0
    %173 = vmatprep.subr.mxu0 0.0
    %174 = vmatpush1.xpose.msra.mxu0 0.0
    %175 = vmatprep.subr.mxu0 0.0
    %176 = vmatpush1.xpose.msra.mxu0 0.0
    %177 = vmatprep.subr.mxu0 0.0
    %178 = vmatpush1.xpose.msra.mxu0 0.0
    %179 = vmatprep.subr.mxu0 0.0
    %180 = vmatpush1.xpose.msra.mxu0 0.0
    %181 = vmatprep.subr.mxu0 0.0
    %182 = vmatpush1.xpose.msra.mxu0 0.0
    %183 = vmatprep.subr.mxu0 0.0
    %184 = vmatpush1.xpose.msra.mxu0 0.0
    %185 = vmatprep.subr.mxu0 0.0
    %186 = vmatpush1.xpose.msra.mxu0 0.0
    %187 = vmatprep.subr.mxu0 0.0
    %188 = vmatpush1.xpose.msra.mxu0 0.0
    %189 = vmatprep.subr.mxu0 0.0
    %190 = vmatpush1.xpose.msra.mxu0 0.0
    %191 = vmatprep.subr.mxu0 0.0
    %192 = vmatpush1.xpose.msra.mxu0 0.0
    %193 = vmatprep.subr.mxu0 0.0
    %194 = vmatpush1.xpose.msra.mxu0 0.0
    %195 = vmatprep.subr.mxu0 0.0
    %196 = vmatpush1.xpose.msra.mxu0 0.0
    %197 = vmatprep.subr.mxu0 0.0
    %198 = vmatpush1.xpose.msra.mxu0 0.0
    %199 = vmatprep.subr.mxu0 0.0
    %200 = vmatpush1.xpose.msra.mxu0 0.0
    %201 = vmatprep.mubr.f32.mxu0 0.0
    %202 = vmatmul.mubr.f32.gmra.mrb[0].mxu0 %v129
    %v203 = vpop.f32.mrb[0].mxu0
    %v204 = vadd.f32 0.0, %v203
    %v205 = vpop.f32.mrb[0].mxu0
    %206 = vdwg.mxu0
    %v207 = vmul.f32 %v123, 2.0
    %v208 = vlaneseq
    %v209 = vshrl.u32 %v208, 7
    %v210 = vsub.s32 0, %v209
    %v211 = vrot.slane %v204, %v210
    %v212 = vsub.f32 %v207, %v211
    %vm213 = vcmask 130048
    %v214 = vsel %vm213, %v212, -inf
    %215 = vmax.xlane.f32.xlu0 %v214
    %v216 = vpop.xlane.xlu0 %215
    %v217 = vlaneseq
    %v218 = vand.u32 %v217, 127
    %vm219 = vcmp.ge.f32.partialorder %v212, %v216
    %v220 = vsel %vm219, %v218, 16
    %v221 = vsel %vm213, %v220, 2147483647
    %v222 = vand.u32 %v221, 65535
    %v223 = vshra.s32 %v221, 16
    %v224 = vcvt.s32.f32 %v222
    %v225 = vcvt.s32.f32 %v223
    %226 = vmin.xlane.f32.xlu0 %v225
    %v227 = vpop.xlane.xlu0 %226
    %vm228 = vcmp.eq.f32.partialorder %v225, %v227
    %v229 = vsel %vm228, %v224, inf
    %230 = vmin.xlane.f32.xlu0 %v229
    %v231 = vpop.xlane.xlu0 %230
    %v232 = vcvt.f32.s32 %v231
    %v233 = vcvt.f32.s32 %v227
    %v234 = vshll.u32 %v233, 16
    %v235 = vadd.s32 %v234, %v232
    %vm236 = vcmp.eq.s32.totalorder %v218, %v235
    %v237 = vsel %vm236, 1, 0
    %v238 = vcvt.s32.f32 %v237
    %v239 = vld [vmem:[%s2] sm:$0xff]
    %v240 = vld [vmem:[%s2 + $0x8] sm:$0xff]
    %v242 = vsel %vm213, %v238, 0
    %244 = vmatprep.subr.mxu0 0.0
    %245 = vmatpush1.msra.mxu0 %v239
    %246 = vmatprep.subr.mxu0 0.0
    %247 = vmatpush1.msra.mxu0 %v240
    %248 = vmatprep.subr.mxu0 0.0
    %249 = vmatpush1.msra.mxu0 0.0
    %250 = vmatprep.subr.mxu0 0.0
    %251 = vmatpush1.msra.mxu0 0.0
    %252 = vmatprep.subr.mxu0 0.0
    %253 = vmatpush1.msra.mxu0 0.0
    %254 = vmatprep.subr.mxu0 0.0
    %255 = vmatpush1.msra.mxu0 0.0
    %256 = vmatprep.subr.mxu0 0.0
    %257 = vmatpush1.msra.mxu0 0.0
    %258 = vmatprep.subr.mxu0 0.0
    %259 = vmatpush1.msra.mxu0 0.0
    %260 = vmatprep.subr.mxu0 0.0
    %261 = vmatpush1.msra.mxu0 0.0
    %262 = vmatprep.subr.mxu0 0.0
    %263 = vmatpush1.msra.mxu0 0.0
    %264 = vmatprep.subr.mxu0 0.0
    %265 = vmatpush1.msra.mxu0 0.0
    %266 = vmatprep.subr.mxu0 0.0
    %267 = vmatpush1.msra.mxu0 0.0
    %268 = vmatprep.subr.mxu0 0.0
    %269 = vmatpush1.msra.mxu0 0.0
    %270 = vmatprep.subr.mxu0 0.0
    %271 = vmatpush1.msra.mxu0 0.0
    %272 = vmatprep.subr.mxu0 0.0
    %273 = vmatpush1.msra.mxu0 0.0
    %274 = vmatprep.subr.mxu0 0.0
    %275 = vmatpush1.msra.mxu0 0.0
    %276 = vmatprep.subr.mxu0 0.0
    %277 = vmatpush1.msra.mxu0 0.0
    %278 = vmatprep.subr.mxu0 0.0
    %279 = vmatpush1.msra.mxu0 0.0
    %280 = vmatprep.subr.mxu0 0.0
    %281 = vmatpush1.msra.mxu0 0.0
    %282 = vmatprep.subr.mxu0 0.0
    %283 = vmatpush1.msra.mxu0 0.0
    %284 = vmatprep.subr.mxu0 0.0
    %285 = vmatpush1.msra.mxu0 0.0
    %286 = vmatprep.subr.mxu0 0.0
    %287 = vmatpush1.msra.mxu0 0.0
    %288 = vmatprep.subr.mxu0 0.0
    %289 = vmatpush1.msra.mxu0 0.0
    %290 = vmatprep.subr.mxu0 0.0
    %291 = vmatpush1.msra.mxu0 0.0
    %292 = vmatprep.subr.mxu0 0.0
    %293 = vmatpush1.msra.mxu0 0.0
    %294 = vmatprep.subr.mxu0 0.0
    %295 = vmatpush1.msra.mxu0 0.0
    %296 = vmatprep.subr.mxu0 0.0
    %297 = vmatpush1.msra.mxu0 0.0
    %298 = vmatprep.subr.mxu0 0.0
    %299 = vmatpush1.msra.mxu0 0.0
    %300 = vmatprep.subr.mxu0 0.0
    %301 = vmatpush1.msra.mxu0 0.0
    %302 = vmatprep.subr.mxu0 0.0
    %303 = vmatpush1.msra.mxu0 0.0
    %304 = vmatprep.subr.mxu0 0.0
    %305 = vmatpush1.msra.mxu0 0.0
    %306 = vmatprep.subr.mxu0 0.0
    %307 = vmatpush1.msra.mxu0 0.0
    %308 = vmatprep.mubr.f32.mxu0 0.0
    %309 = vmatmul.mubr.f32.gmra.mrb[0].mxu0 %v242
    %v310 = vpop.f32.mrb[0].mxu0
    %v311 = vadd.f32 0.0, %v310
    %v312 = vpop.f32.mrb[0].mxu0
    %313 = vdwg.mxu0
    %v314 = vld [vmem:[#allocation2] sm:$0xff]
    %v315 = vld [vmem:[#allocation2 + $0x8] sm:$0xff]
    %v316 = vld [vmem:[#allocation2 + $0x10] sm:$0xff]
    %v317 = vld [vmem:[#allocation2 + $0x18] sm:$0xff]
    %v318 = vld [vmem:[#allocation2 + $0x20] sm:$0xff]
    %v319 = vld [vmem:[#allocation2 + $0x28] sm:$0xff]
    %v320 = vld [vmem:[#allocation2 + $0x30] sm:$0xff]
    %v321 = vld [vmem:[#allocation2 + $0x38] sm:$0xff]
    %v322 = vld [vmem:[#allocation2 + $0x40] sm:$0xff]
    %v323 = vld [vmem:[#allocation2 + $0x48] sm:$0xff]
    %v324 = vld [vmem:[#allocation2 + $0x50] sm:$0xff]
    %v325 = vld [vmem:[#allocation2 + $0x58] sm:$0xff]
    %v326 = vld [vmem:[#allocation2 + $0x60] sm:$0xff]
    %v327 = vld [vmem:[#allocation2 + $0x68] sm:$0xff]
    %v328 = vld [vmem:[#allocation2 + $0x70] sm:$0xff]
    %v329 = vld [vmem:[#allocation2 + $0x78] sm:$0xff]
    %v330 = vld [vmem:[%s4] sm:$0x3]
    %v332 = vlaneseq
    %v333 = vshrl.u32 %v332, 7
    %v334 = vsub.s32 0, %v333
    %v335 = vrot.slane %v330, %v334
    %v336 = vlaneseq
    %v337 = vshrl.u32 %v336, 7
    %v338 = vsub.s32 1, %v337
    %v339 = vrot.slane %v330, %v338
    %vm342 = vcmask 523264
    %v343 = vsel %vm342, %v41, 0
    %345 = vmatprep.subr.mxu0 %v315
    %346 = vmatpush1.msra.mxu0 %v314
    %347 = vmatprep.subr.mxu0 %v317
    %348 = vmatpush1.msra.mxu0 %v316
    %349 = vmatprep.subr.mxu0 %v319
    %350 = vmatpush1.msra.mxu0 %v318
    %351 = vmatprep.subr.mxu0 %v321
    %352 = vmatpush1.msra.mxu0 %v320
    %353 = vmatprep.subr.mxu0 %v323
    %354 = vmatpush1.msra.mxu0 %v322
    %355 = vmatprep.subr.mxu0 %v325
    %356 = vmatpush1.msra.mxu0 %v324
    %357 = vmatprep.subr.mxu0 %v327
    %358 = vmatpush1.msra.mxu0 %v326
    %359 = vmatprep.subr.mxu0 %v329
    %360 = vmatpush1.msra.mxu0 %v328
    %361 = vmatprep.subr.mxu0 0.0
    %362 = vmatpush1.msra.mxu0 0.0
    %363 = vmatprep.subr.mxu0 0.0
    %364 = vmatpush1.msra.mxu0 0.0
    %365 = vmatprep.subr.mxu0 0.0
    %366 = vmatpush1.msra.mxu0 0.0
    %367 = vmatprep.subr.mxu0 0.0
    %368 = vmatpush1.msra.mxu0 0.0
    %369 = vmatprep.subr.mxu0 0.0
    %370 = vmatpush1.msra.mxu0 0.0
    %371 = vmatprep.subr.mxu0 0.0
    %372 = vmatpush1.msra.mxu0 0.0
    %373 = vmatprep.subr.mxu0 0.0
    %374 = vmatpush1.msra.mxu0 0.0
    %375 = vmatprep.subr.mxu0 0.0
    %376 = vmatpush1.msra.mxu0 0.0
    %377 = vmatprep.subr.mxu0 0.0
    %378 = vmatpush1.msra.mxu0 0.0
    %379 = vmatprep.subr.mxu0 0.0
    %380 = vmatpush1.msra.mxu0 0.0
    %381 = vmatprep.subr.mxu0 0.0
    %382 = vmatpush1.msra.mxu0 0.0
    %383 = vmatprep.subr.mxu0 0.0
    %384 = vmatpush1.msra.mxu0 0.0
    %385 = vmatprep.subr.mxu0 0.0
    %386 = vmatpush1.msra.mxu0 0.0
    %387 = vmatprep.subr.mxu0 0.0
    %388 = vmatpush1.msra.mxu0 0.0
    %389 = vmatprep.subr.mxu0 0.0
    %390 = vmatpush1.msra.mxu0 0.0
    %391 = vmatprep.subr.mxu0 0.0
    %392 = vmatpush1.msra.mxu0 0.0
    %393 = vmatprep.subr.mxu0 0.0
    %394 = vmatpush1.msra.mxu0 0.0
    %395 = vmatprep.subr.mxu0 0.0
    %396 = vmatpush1.msra.mxu0 0.0
    %397 = vmatprep.subr.mxu0 0.0
    %398 = vmatpush1.msra.mxu0 0.0
    %399 = vmatprep.subr.mxu0 0.0
    %400 = vmatpush1.msra.mxu0 0.0
    %401 = vmatprep.subr.mxu0 0.0
    %402 = vmatpush1.msra.mxu0 0.0
    %403 = vmatprep.subr.mxu0 0.0
    %404 = vmatpush1.msra.mxu0 0.0
    %405 = vmatprep.subr.mxu0 0.0
    %406 = vmatpush1.msra.mxu0 0.0
    %407 = vmatprep.subr.mxu0 0.0
    %408 = vmatpush1.msra.mxu0 0.0
    %409 = vmatprep.mubr.f32.mxu0 0.0
    %410 = vmatmul.mubr.f32.gmra.mrb[0].mxu0 %v343
    %v411 = vpop.f32.mrb[0].mxu0
    %v412 = vadd.f32 %v335, %v411
    %v413 = vpop.f32.mrb[0].mxu0
    %v414 = vadd.f32 %v339, %v413
    %415 = vdwg.mxu0
    %v416 = vxor.u32 %v412, 2147483648
    %v417 = vmul.f32 %v416, 1.442695
    %v418 = vpow.pop %v417
    %v419 = vadd.f32 %v418, 1.0
    %v420 = vrcp.pop %v419
    %v421 = vmul.f32 1.0, %v420
    %v422 = vtanh.pop %v414
    %424 = vrot.lane.b32.xlu0 %v421, 96
    %v425 = vpop.permute.xlu0 %424
    %v427 = vmul.f32 %v41, %v425
    %429 = vrot.lane.b32.xlu0 %v422, 32
    %v430 = vpop.permute.xlu0 %429
    %v432 = vmul.f32 %v421, %v430
    %434 = vrot.lane.b32.xlu0 %v432, 64
    %v435 = vpop.permute.xlu0 %434
    %v437 = vadd.f32 %v427, %v435
    %v438 = vtanh.pop %v311
    %440 = vrot.lane.b32.xlu0 %v438, 96
    %v441 = vpop.permute.xlu0 %440
    %v443 = vmul.f32 %v421, %v441
    %v444 = vadd.f32 %v437, %v443
    %v445 = vtanh.pop %v444
    %447 = vrot.lane.b32.xlu0 %v445, 96
    %v448 = vpop.permute.xlu0 %447
    %v450 = vmul.f32 %v421, %v448
    %v451 = vld [vmem:[%s5] sm:$0xff]
    %v452 = vld [vmem:[%s5 + $0x8] sm:$0xff]
    %v453 = vld [vmem:[%s5 + $0x10] sm:$0xff]
    %v454 = vld [vmem:[%s5 + $0x18] sm:$0xff]
    %v455 = vld [vmem:[%s6] sm:$0x1]
    %v457 = vlaneseq
    %v458 = vshrl.u32 %v457, 7
    %v459 = vsub.s32 0, %v458
    %v460 = vrot.slane %v455, %v459
    %463 = vrot.lane.b32.xlu0 %v450, 64
    %v464 = vpop.permute.xlu0 %463
    %v465 = vsel %vm47, %v464, 0
    %467 = vmatprep.subr.mxu0 0.0
    %468 = vmatpush1.msra.mxu0 %v451
    %469 = vmatprep.subr.mxu0 0.0
    %470 = vmatpush1.msra.mxu0 %v452
    %471 = vmatprep.subr.mxu0 0.0
    %472 = vmatpush1.msra.mxu0 %v453
    %473 = vmatprep.subr.mxu0 0.0
    %474 = vmatpush1.msra.mxu0 %v454
    %475 = vmatprep.subr.mxu0 0.0
    %476 = vmatpush1.msra.mxu0 0.0
    %477 = vmatprep.subr.mxu0 0.0
    %478 = vmatpush1.msra.mxu0 0.0
    %479 = vmatprep.subr.mxu0 0.0
    %480 = vmatpush1.msra.mxu0 0.0
    %481 = vmatprep.subr.mxu0 0.0
    %482 = vmatpush1.msra.mxu0 0.0
    %483 = vmatprep.subr.mxu0 0.0
    %484 = vmatpush1.msra.mxu0 0.0
    %485 = vmatprep.subr.mxu0 0.0
    %486 = vmatpush1.msra.mxu0 0.0
    %487 = vmatprep.subr.mxu0 0.0
    %488 = vmatpush1.msra.mxu0 0.0
    %489 = vmatprep.subr.mxu0 0.0
    %490 = vmatpush1.msra.mxu0 0.0
    %491 = vmatprep.subr.mxu0 0.0
    %492 = vmatpush1.msra.mxu0 0.0
    %493 = vmatprep.subr.mxu0 0.0
    %494 = vmatpush1.msra.mxu0 0.0
    %495 = vmatprep.subr.mxu0 0.0
    %496 = vmatpush1.msra.mxu0 0.0
    %497 = vmatprep.subr.mxu0 0.0
    %498 = vmatpush1.msra.mxu0 0.0
    %499 = vmatprep.subr.mxu0 0.0
    %500 = vmatpush1.msra.mxu0 0.0
    %501 = vmatprep.subr.mxu0 0.0
    %502 = vmatpush1.msra.mxu0 0.0
    %503 = vmatprep.subr.mxu0 0.0
    %504 = vmatpush1.msra.mxu0 0.0
    %505 = vmatprep.subr.mxu0 0.0
    %506 = vmatpush1.msra.mxu0 0.0
    %507 = vmatprep.subr.mxu0 0.0
    %508 = vmatpush1.msra.mxu0 0.0
    %509 = vmatprep.subr.mxu0 0.0
    %510 = vmatpush1.msra.mxu0 0.0
    %511 = vmatprep.subr.mxu0 0.0
    %512 = vmatpush1.msra.mxu0 0.0
    %513 = vmatprep.subr.mxu0 0.0
    %514 = vmatpush1.msra.mxu0 0.0
    %515 = vmatprep.subr.mxu0 0.0
    %516 = vmatpush1.msra.mxu0 0.0
    %517 = vmatprep.subr.mxu0 0.0
    %518 = vmatpush1.msra.mxu0 0.0
    %519 = vmatprep.subr.mxu0 0.0
    %520 = vmatpush1.msra.mxu0 0.0
    %521 = vmatprep.subr.mxu0 0.0
    %522 = vmatpush1.msra.mxu0 0.0
    %523 = vmatprep.subr.mxu0 0.0
    %524 = vmatpush1.msra.mxu0 0.0
    %525 = vmatprep.subr.mxu0 0.0
    %526 = vmatpush1.msra.mxu0 0.0
    %527 = vmatprep.subr.mxu0 0.0
    %528 = vmatpush1.msra.mxu0 0.0
    %529 = vmatprep.subr.mxu0 0.0
    %530 = vmatpush1.msra.mxu0 0.0
    %531 = vmatprep.mubr.f32.mxu0 0.0
    %532 = vmatmul.mubr.f32.gmra.mrb[0].mxu0 %v465
    %v533 = vpop.f32.mrb[0].mxu0
    %v534 = vadd.f32 %v460, %v533
    %v535 = vpop.f32.mrb[0].mxu0
    %536 = vdwg.mxu0
    %vm537 = vcmask 31744
    %v538 = vsel %vm537, %v534, -inf
    %539 = vmax.xlane.f32.xlu0 %v538
    %v540 = vpop.xlane.xlu0 %539
    %v541 = vsub.f32 %v534, %v540
    %v542 = vmul.f32 %v541, 1.442695
    %v543 = vpow.pop %v542
    %v544 = vsel %vm537, %v543, 0.0
    %545 = vadd.xlane.f32.xlu0 %v544
    %v546 = vpop.xlane.xlu0 %545
    %v547 = vrcp.pop %v546
    %v548 = vmul.f32 %v543, %v547
    %549 = vrot.lane.b32.xlu0 %v450, 69
    %v550 = vpop.permute.xlu0 %549
    %553 = vrot.lane.b32.xlu0 %v444, 69
    %v554 = vpop.permute.xlu0 %553
    %v556 = vsel %vm537, %v548, %v534
    %vm557 = vcmask 39936
    %v558 = vsel %vm557, %v556, %v550
    %vm559 = vcmask 302080
    %v560 = vsel %vm559, %v558, %v554
    %vm561 = vcmask 564224
    %v562 = vsel %vm561, %v560, 0.0
    %563 = vst [vmem:[#allocation5] sm:$0xff] %v562
    // Predicated region
    $region34: #{tpu_custom_call.1} parent=1 // pred_check
      _
    $region35: #{tpu_custom_call.1} parent=1 // pred_check_branch
      %565 = sbr.rel (0) target = $region37
    $region36: #{tpu_custom_call.1} parent=1 // pred_region
      %s567 = ssub.s32 128, 128
      %568 = vsyncadd [#allocation4], %s567
      %s570 = sshll.u32 [#allocation5], 4
      %s571 = int_to_ptr.vmem [resolvable:$true] %s570
      %573 = dma.vmem_to_hbm [thread:$0]  %s571, 128, %s7, [#allocation4]
    $region37: #{tpu_custom_call.1} parent=1 // pred_fallthru
      _
    // Predicated region
    $region38: #{tpu_custom_call.1} parent=1 // pred_check
      _
    $region39: #{tpu_custom_call.1} parent=1 // pred_check_branch
      %575 = sbr.rel (0) target = $region41
    $region40: #{tpu_custom_call.1} parent=1 // pred_region
      %576 = dma.done [#allocation4], 128
    $region41: #{tpu_custom_call.1} parent=1 // pred_fallthru
      _
    %577 = vsyncpa [#allocation3], 1
    %578 = vsyncpa [#allocation4], 1

</llo_original>
